<compile_context>
chip_gen: v6e
topology: v6e:2x2x1
jax: 0.10.0
libtpu: 0.0.40
codegen_flags: <defaults>
</compile_context>

<pallas_src>
import functools

import jax
import jax.numpy as jnp
from jax import lax
from jax.experimental import pallas as pl
from jax.experimental.pallas import tpu as pltpu

_LANES = 128        # vreg lane width
_CHUNK_ROWS = 16    # rows processed per in-kernel loop step (2 vregs/array)


def _make_relational_embed_kernel(num_objects, block_rows):
    """Kernel factory; num_objects (O) and block_rows are compile-time consts."""
    O = num_objects
    assert block_rows % _CHUNK_ROWS == 0
    n_chunks = block_rows // _CHUNK_ROWS

    def _kernel(tbl_ref, x_ref, y_ref, o_ref):
        # tbl_ref: (O*O,) f32 in SMEM -- sigmoid(logits) flattened row-major.
        # x_ref  : (block_rows, 128) int32 row indices
        # y_ref  : (block_rows, 128) int32 column indices
        # o_ref  : (block_rows, 128) f32 outputs

        def chunk_body(c, carry):
            r0 = pl.multiple_of(c * _CHUNK_ROWS, _CHUNK_ROWS)

            # ---- level 1: row_vals[i][n] = sigmoid_table[i, y[n]] ----------
            # One y-mask live at a time (j outer), reused across all O rows,
            # so compares are O(O) and selects O(O^2) per chunk.
            yv = y_ref[pl.ds(r0, _CHUNK_ROWS), :]
            row_vals = [None] * O
            for j in range(O):
                mj = yv == j                              # VPU compare (shared)
                for i in range(O):
                    v = tbl_ref[i * O + j]                # SMEM scalar
                    prev = 0.0 if j == 0 else row_vals[i]
                    row_vals[i] = jnp.where(mj, v, prev)  # VPU select

            # ---- level 2: pick the row selected by x -----------------------
            xv = x_ref[pl.ds(r0, _CHUNK_ROWS), :]
            # Out-of-range indices fall through to 0.0 (PyTorch advanced
            # indexing would raise instead).
            out = jnp.where(xv == 0, row_vals[0], 0.0)
            for i in range(1, O):
                out = jnp.where(xv == i, row_vals[i], out)

            o_ref[pl.ds(r0, _CHUNK_ROWS), :] = out
            return carry

        lax.fori_loop(0, n_chunks, chunk_body, 0)

    return _kernel


def relational_independent_embed(logits, x, y, *, block_rows=1024):
    """out = sigmoid(logits[x, y]); x, y integer tensors of identical shape.

    The SMEM compare/select gather path is intended for small O
    (O*O up to a few hundred entries), matching the module's use.
    """
    # TODO(synk): for large O (O*O >> few hundred) switch to a VMEM-resident
    # table with a one-hot/MXU or DMA-gather path instead of the select chain.
    assert x.shape == y.shape
    orig_shape = x.shape
    num_objects = logits.shape[0]

    # sigmoid applied once to the tiny O*O table (fuses into the wrapper's
    # existing pad/reshape XLA program); the kernel is then a pure gather.
    probs = jax.nn.sigmoid(logits.astype(jnp.float32)).reshape(-1)   # (O*O,)

    xf = x.astype(jnp.int32).reshape(-1)
    yf = y.astype(jnp.int32).reshape(-1)
    n = xf.shape[0]

    # Lane-dense (rows, 128) layout, rows a whole number of blocks,
    # blocks a whole number of in-kernel chunks.
    rows_needed = pl.cdiv(max(n, 1), _LANES)
    block_rows = max(_CHUNK_ROWS, (block_rows // _CHUNK_ROWS) * _CHUNK_ROWS)
    block_rows = min(block_rows, pl.cdiv(rows_needed, _CHUNK_ROWS) * _CHUNK_ROWS)
    rows = pl.cdiv(rows_needed, block_rows) * block_rows
    n_pad = rows * _LANES

    xf = jnp.pad(xf, (0, n_pad - n)).reshape(rows, _LANES)
    yf = jnp.pad(yf, (0, n_pad - n)).reshape(rows, _LANES)

    grid = (rows // block_rows,)
    out = pl.pallas_call(
        _make_relational_embed_kernel(num_objects, block_rows),
        out_shape=jax.ShapeDtypeStruct((rows, _LANES), jnp.float32),
        grid=grid,
        in_specs=[
            # sigmoid(logits) table: whole array, scalar memory.
            pl.BlockSpec(memory_space=pltpu.MemorySpace.SMEM),
            # x / y indices: lane-dense tiles streamed over the N grid.
            pl.BlockSpec((block_rows, _LANES), lambda i: (i, 0)),
            pl.BlockSpec((block_rows, _LANES), lambda i: (i, 0)),
        ],
        out_specs=pl.BlockSpec((block_rows, _LANES), lambda i: (i, 0)),
        compiler_params=pltpu.CompilerParams(
            dimension_semantics=("parallel",),
        ),
    )(probs, xf, yf)

    return out.reshape(-1)[:n].reshape(orig_shape)


if __name__ == "__main__":
    key = jax.random.PRNGKey(0)
    k_logits, k_x, k_y = jax.random.split(key, 3)

    num_objects = 8
    # Module __init__ uses zeros; use a deterministic non-trivial init so the
    # gather is actually exercised (same shape as nn.Parameter(O, O)).
    logits = jax.random.normal(k_logits, (num_objects, num_objects),
                               dtype=jnp.float32)

    # Index tensors (batch=2, seq=8), values in [0, num_objects)
    x = jax.random.randint(k_x, (2, 8), 0, num_objects, dtype=jnp.int32)
    y = jax.random.randint(k_y, (2, 8), 0, num_objects, dtype=jnp.int32)

    out = jax.block_until_ready(relational_independent_embed(logits, x, y))

    ref = jax.nn.sigmoid(logits[x, y])
    assert out.shape == x.shape
    # Exact gather of precomputed sigmoid values -> tight tolerance.
    assert jnp.allclose(out, ref, atol=1e-6, rtol=1e-6), (out, ref)

    # Second run: larger problem with a small block size so the kernel runs a
    # multi-step grid (grid > 1) and multiple in-kernel chunks per block.
    k_x2, k_y2 = jax.random.split(k_y)
    x2 = jax.random.randint(k_x2, (8, 2048), 0, num_objects, dtype=jnp.int32)
    y2 = jax.random.randint(k_y2, (8, 2048), 0, num_objects, dtype=jnp.int32)
    out2 = jax.block_until_ready(
        relational_independent_embed(logits, x2, y2, block_rows=32))
    ref2 = jax.nn.sigmoid(logits[x2, y2])
    assert jnp.allclose(out2, ref2, atol=1e-6, rtol=1e-6)

    print("KERNEL_OK")
</pallas_src>

<mosaic_0001>
module attributes {stable_mosaic.version = 11 : i64} {
  func.func @_kernel(%arg0: i32, %arg1: memref<64xf32, #tpu.memory_space<smem>>, %arg2: memref<16x128xi32, #tpu.memory_space<vmem>>, %arg3: memref<16x128xi32, #tpu.memory_space<vmem>>, %arg4: memref<16x128xf32, #tpu.memory_space<vmem>>) attributes {dimension_semantics = [#tpu.dimension_semantics<parallel>], iteration_bounds = array<i64: 1>, scalar_prefetch = 0 : i64, scratch_operands = 0 : i64, tpu.core_type = #tpu.core_type<tc>, window_params = [{transform_indices = @transform_0, window_bounds = array<i64: 64>}, {transform_indices = @transform_1, window_bounds = array<i64: 16, 128>}, {transform_indices = @transform_2, window_bounds = array<i64: 16, 128>}, {transform_indices = @transform_3, window_bounds = array<i64: 16, 128>}]} {
    %c0_i32 = arith.constant 0 : i32
    %c16_i32 = arith.constant 16 : i32
    %0 = arith.muli %c0_i32, %c16_i32 : i32
    %1 = tpu.assume_multiple %0, 16 : i32
    %2 = arith.index_cast %1 : i32 to index
    %c0 = arith.constant 0 : index
    %3 = vector.load %arg3[%2, %c0] : memref<16x128xi32, #tpu.memory_space<vmem>>, vector<16x128xi32>
    %c0_i32_0 = arith.constant 0 : i32
    %4 = vector.broadcast %c0_i32_0 : i32 to vector<16x128xi32>
    %5 = arith.cmpi eq, %3, %4 : vector<16x128xi32>
    %c0_1 = arith.constant 0 : index
    %6 = memref.load %arg1[%c0_1] : memref<64xf32, #tpu.memory_space<smem>>
    %cst = arith.constant 0.000000e+00 : f32
    %7 = vector.broadcast %6 : f32 to vector<16x128xf32>
    %8 = vector.broadcast %cst : f32 to vector<16x128xf32>
    %9 = arith.select %5, %7, %8 : vector<16x128xi1>, vector<16x128xf32>
    %c8 = arith.constant 8 : index
    %10 = memref.load %arg1[%c8] : memref<64xf32, #tpu.memory_space<smem>>
    %cst_2 = arith.constant 0.000000e+00 : f32
    %11 = vector.broadcast %10 : f32 to vector<16x128xf32>
    %12 = vector.broadcast %cst_2 : f32 to vector<16x128xf32>
    %13 = arith.select %5, %11, %12 : vector<16x128xi1>, vector<16x128xf32>
    %c16 = arith.constant 16 : index
    %14 = memref.load %arg1[%c16] : memref<64xf32, #tpu.memory_space<smem>>
    %cst_3 = arith.constant 0.000000e+00 : f32
    %15 = vector.broadcast %14 : f32 to vector<16x128xf32>
    %16 = vector.broadcast %cst_3 : f32 to vector<16x128xf32>
    %17 = arith.select %5, %15, %16 : vector<16x128xi1>, vector<16x128xf32>
    %c24 = arith.constant 24 : index
    %18 = memref.load %arg1[%c24] : memref<64xf32, #tpu.memory_space<smem>>
    %cst_4 = arith.constant 0.000000e+00 : f32
    %19 = vector.broadcast %18 : f32 to vector<16x128xf32>
    %20 = vector.broadcast %cst_4 : f32 to vector<16x128xf32>
    %21 = arith.select %5, %19, %20 : vector<16x128xi1>, vector<16x128xf32>
    %c32 = arith.constant 32 : index
    %22 = memref.load %arg1[%c32] : memref<64xf32, #tpu.memory_space<smem>>
    %cst_5 = arith.constant 0.000000e+00 : f32
    %23 = vector.broadcast %22 : f32 to vector<16x128xf32>
    %24 = vector.broadcast %cst_5 : f32 to vector<16x128xf32>
    %25 = arith.select %5, %23, %24 : vector<16x128xi1>, vector<16x128xf32>
    %c40 = arith.constant 40 : index
    %26 = memref.load %arg1[%c40] : memref<64xf32, #tpu.memory_space<smem>>
    %cst_6 = arith.constant 0.000000e+00 : f32
    %27 = vector.broadcast %26 : f32 to vector<16x128xf32>
    %28 = vector.broadcast %cst_6 : f32 to vector<16x128xf32>
    %29 = arith.select %5, %27, %28 : vector<16x128xi1>, vector<16x128xf32>
    %c48 = arith.constant 48 : index
    %30 = memref.load %arg1[%c48] : memref<64xf32, #tpu.memory_space<smem>>
    %cst_7 = arith.constant 0.000000e+00 : f32
    %31 = vector.broadcast %30 : f32 to vector<16x128xf32>
    %32 = vector.broadcast %cst_7 : f32 to vector<16x128xf32>
    %33 = arith.select %5, %31, %32 : vector<16x128xi1>, vector<16x128xf32>
    %c56 = arith.constant 56 : index
    %34 = memref.load %arg1[%c56] : memref<64xf32, #tpu.memory_space<smem>>
    %cst_8 = arith.constant 0.000000e+00 : f32
    %35 = vector.broadcast %34 : f32 to vector<16x128xf32>
    %36 = vector.broadcast %cst_8 : f32 to vector<16x128xf32>
    %37 = arith.select %5, %35, %36 : vector<16x128xi1>, vector<16x128xf32>
    %c1_i32 = arith.constant 1 : i32
    %38 = vector.broadcast %c1_i32 : i32 to vector<16x128xi32>
    %39 = arith.cmpi eq, %3, %38 : vector<16x128xi32>
    %c1 = arith.constant 1 : index
    %40 = memref.load %arg1[%c1] : memref<64xf32, #tpu.memory_space<smem>>
    %41 = vector.broadcast %40 : f32 to vector<16x128xf32>
    %42 = arith.select %39, %41, %9 : vector<16x128xi1>, vector<16x128xf32>
    %c9 = arith.constant 9 : index
    %43 = memref.load %arg1[%c9] : memref<64xf32, #tpu.memory_space<smem>>
    %44 = vector.broadcast %43 : f32 to vector<16x128xf32>
    %45 = arith.select %39, %44, %13 : vector<16x128xi1>, vector<16x128xf32>
    %c17 = arith.constant 17 : index
    %46 = memref.load %arg1[%c17] : memref<64xf32, #tpu.memory_space<smem>>
    %47 = vector.broadcast %46 : f32 to vector<16x128xf32>
    %48 = arith.select %39, %47, %17 : vector<16x128xi1>, vector<16x128xf32>
    %c25 = arith.constant 25 : index
    %49 = memref.load %arg1[%c25] : memref<64xf32, #tpu.memory_space<smem>>
    %50 = vector.broadcast %49 : f32 to vector<16x128xf32>
    %51 = arith.select %39, %50, %21 : vector<16x128xi1>, vector<16x128xf32>
    %c33 = arith.constant 33 : index
    %52 = memref.load %arg1[%c33] : memref<64xf32, #tpu.memory_space<smem>>
    %53 = vector.broadcast %52 : f32 to vector<16x128xf32>
    %54 = arith.select %39, %53, %25 : vector<16x128xi1>, vector<16x128xf32>
    %c41 = arith.constant 41 : index
    %55 = memref.load %arg1[%c41] : memref<64xf32, #tpu.memory_space<smem>>
    %56 = vector.broadcast %55 : f32 to vector<16x128xf32>
    %57 = arith.select %39, %56, %29 : vector<16x128xi1>, vector<16x128xf32>
    %c49 = arith.constant 49 : index
    %58 = memref.load %arg1[%c49] : memref<64xf32, #tpu.memory_space<smem>>
    %59 = vector.broadcast %58 : f32 to vector<16x128xf32>
    %60 = arith.select %39, %59, %33 : vector<16x128xi1>, vector<16x128xf32>
    %c57 = arith.constant 57 : index
    %61 = memref.load %arg1[%c57] : memref<64xf32, #tpu.memory_space<smem>>
    %62 = vector.broadcast %61 : f32 to vector<16x128xf32>
    %63 = arith.select %39, %62, %37 : vector<16x128xi1>, vector<16x128xf32>
    %c2_i32 = arith.constant 2 : i32
    %64 = vector.broadcast %c2_i32 : i32 to vector<16x128xi32>
    %65 = arith.cmpi eq, %3, %64 : vector<16x128xi32>
    %c2 = arith.constant 2 : index
    %66 = memref.load %arg1[%c2] : memref<64xf32, #tpu.memory_space<smem>>
    %67 = vector.broadcast %66 : f32 to vector<16x128xf32>
    %68 = arith.select %65, %67, %42 : vector<16x128xi1>, vector<16x128xf32>
    %c10 = arith.constant 10 : index
    %69 = memref.load %arg1[%c10] : memref<64xf32, #tpu.memory_space<smem>>
    %70 = vector.broadcast %69 : f32 to vector<16x128xf32>
    %71 = arith.select %65, %70, %45 : vector<16x128xi1>, vector<16x128xf32>
    %c18 = arith.constant 18 : index
    %72 = memref.load %arg1[%c18] : memref<64xf32, #tpu.memory_space<smem>>
    %73 = vector.broadcast %72 : f32 to vector<16x128xf32>
    %74 = arith.select %65, %73, %48 : vector<16x128xi1>, vector<16x128xf32>
    %c26 = arith.constant 26 : index
    %75 = memref.load %arg1[%c26] : memref<64xf32, #tpu.memory_space<smem>>
    %76 = vector.broadcast %75 : f32 to vector<16x128xf32>
    %77 = arith.select %65, %76, %51 : vector<16x128xi1>, vector<16x128xf32>
    %c34 = arith.constant 34 : index
    %78 = memref.load %arg1[%c34] : memref<64xf32, #tpu.memory_space<smem>>
    %79 = vector.broadcast %78 : f32 to vector<16x128xf32>
    %80 = arith.select %65, %79, %54 : vector<16x128xi1>, vector<16x128xf32>
    %c42 = arith.constant 42 : index
    %81 = memref.load %arg1[%c42] : memref<64xf32, #tpu.memory_space<smem>>
    %82 = vector.broadcast %81 : f32 to vector<16x128xf32>
    %83 = arith.select %65, %82, %57 : vector<16x128xi1>, vector<16x128xf32>
    %c50 = arith.constant 50 : index
    %84 = memref.load %arg1[%c50] : memref<64xf32, #tpu.memory_space<smem>>
    %85 = vector.broadcast %84 : f32 to vector<16x128xf32>
    %86 = arith.select %65, %85, %60 : vector<16x128xi1>, vector<16x128xf32>
    %c58 = arith.constant 58 : index
    %87 = memref.load %arg1[%c58] : memref<64xf32, #tpu.memory_space<smem>>
    %88 = vector.broadcast %87 : f32 to vector<16x128xf32>
    %89 = arith.select %65, %88, %63 : vector<16x128xi1>, vector<16x128xf32>
    %c3_i32 = arith.constant 3 : i32
    %90 = vector.broadcast %c3_i32 : i32 to vector<16x128xi32>
    %91 = arith.cmpi eq, %3, %90 : vector<16x128xi32>
    %c3 = arith.constant 3 : index
    %92 = memref.load %arg1[%c3] : memref<64xf32, #tpu.memory_space<smem>>
    %93 = vector.broadcast %92 : f32 to vector<16x128xf32>
    %94 = arith.select %91, %93, %68 : vector<16x128xi1>, vector<16x128xf32>
    %c11 = arith.constant 11 : index
    %95 = memref.load %arg1[%c11] : memref<64xf32, #tpu.memory_space<smem>>
    %96 = vector.broadcast %95 : f32 to vector<16x128xf32>
    %97 = arith.select %91, %96, %71 : vector<16x128xi1>, vector<16x128xf32>
    %c19 = arith.constant 19 : index
    %98 = memref.load %arg1[%c19] : memref<64xf32, #tpu.memory_space<smem>>
    %99 = vector.broadcast %98 : f32 to vector<16x128xf32>
    %100 = arith.select %91, %99, %74 : vector<16x128xi1>, vector<16x128xf32>
    %c27 = arith.constant 27 : index
    %101 = memref.load %arg1[%c27] : memref<64xf32, #tpu.memory_space<smem>>
    %102 = vector.broadcast %101 : f32 to vector<16x128xf32>
    %103 = arith.select %91, %102, %77 : vector<16x128xi1>, vector<16x128xf32>
    %c35 = arith.constant 35 : index
    %104 = memref.load %arg1[%c35] : memref<64xf32, #tpu.memory_space<smem>>
    %105 = vector.broadcast %104 : f32 to vector<16x128xf32>
    %106 = arith.select %91, %105, %80 : vector<16x128xi1>, vector<16x128xf32>
    %c43 = arith.constant 43 : index
    %107 = memref.load %arg1[%c43] : memref<64xf32, #tpu.memory_space<smem>>
    %108 = vector.broadcast %107 : f32 to vector<16x128xf32>
    %109 = arith.select %91, %108, %83 : vector<16x128xi1>, vector<16x128xf32>
    %c51 = arith.constant 51 : index
    %110 = memref.load %arg1[%c51] : memref<64xf32, #tpu.memory_space<smem>>
    %111 = vector.broadcast %110 : f32 to vector<16x128xf32>
    %112 = arith.select %91, %111, %86 : vector<16x128xi1>, vector<16x128xf32>
    %c59 = arith.constant 59 : index
    %113 = memref.load %arg1[%c59] : memref<64xf32, #tpu.memory_space<smem>>
    %114 = vector.broadcast %113 : f32 to vector<16x128xf32>
    %115 = arith.select %91, %114, %89 : vector<16x128xi1>, vector<16x128xf32>
    %c4_i32 = arith.constant 4 : i32
    %116 = vector.broadcast %c4_i32 : i32 to vector<16x128xi32>
    %117 = arith.cmpi eq, %3, %116 : vector<16x128xi32>
    %c4 = arith.constant 4 : index
    %118 = memref.load %arg1[%c4] : memref<64xf32, #tpu.memory_space<smem>>
    %119 = vector.broadcast %118 : f32 to vector<16x128xf32>
    %120 = arith.select %117, %119, %94 : vector<16x128xi1>, vector<16x128xf32>
    %c12 = arith.constant 12 : index
    %121 = memref.load %arg1[%c12] : memref<64xf32, #tpu.memory_space<smem>>
    %122 = vector.broadcast %121 : f32 to vector<16x128xf32>
    %123 = arith.select %117, %122, %97 : vector<16x128xi1>, vector<16x128xf32>
    %c20 = arith.constant 20 : index
    %124 = memref.load %arg1[%c20] : memref<64xf32, #tpu.memory_space<smem>>
    %125 = vector.broadcast %124 : f32 to vector<16x128xf32>
    %126 = arith.select %117, %125, %100 : vector<16x128xi1>, vector<16x128xf32>
    %c28 = arith.constant 28 : index
    %127 = memref.load %arg1[%c28] : memref<64xf32, #tpu.memory_space<smem>>
    %128 = vector.broadcast %127 : f32 to vector<16x128xf32>
    %129 = arith.select %117, %128, %103 : vector<16x128xi1>, vector<16x128xf32>
    %c36 = arith.constant 36 : index
    %130 = memref.load %arg1[%c36] : memref<64xf32, #tpu.memory_space<smem>>
    %131 = vector.broadcast %130 : f32 to vector<16x128xf32>
    %132 = arith.select %117, %131, %106 : vector<16x128xi1>, vector<16x128xf32>
    %c44 = arith.constant 44 : index
    %133 = memref.load %arg1[%c44] : memref<64xf32, #tpu.memory_space<smem>>
    %134 = vector.broadcast %133 : f32 to vector<16x128xf32>
    %135 = arith.select %117, %134, %109 : vector<16x128xi1>, vector<16x128xf32>
    %c52 = arith.constant 52 : index
    %136 = memref.load %arg1[%c52] : memref<64xf32, #tpu.memory_space<smem>>
    %137 = vector.broadcast %136 : f32 to vector<16x128xf32>
    %138 = arith.select %117, %137, %112 : vector<16x128xi1>, vector<16x128xf32>
    %c60 = arith.constant 60 : index
    %139 = memref.load %arg1[%c60] : memref<64xf32, #tpu.memory_space<smem>>
    %140 = vector.broadcast %139 : f32 to vector<16x128xf32>
    %141 = arith.select %117, %140, %115 : vector<16x128xi1>, vector<16x128xf32>
    %c5_i32 = arith.constant 5 : i32
    %142 = vector.broadcast %c5_i32 : i32 to vector<16x128xi32>
    %143 = arith.cmpi eq, %3, %142 : vector<16x128xi32>
    %c5 = arith.constant 5 : index
    %144 = memref.load %arg1[%c5] : memref<64xf32, #tpu.memory_space<smem>>
    %145 = vector.broadcast %144 : f32 to vector<16x128xf32>
    %146 = arith.select %143, %145, %120 : vector<16x128xi1>, vector<16x128xf32>
    %c13 = arith.constant 13 : index
    %147 = memref.load %arg1[%c13] : memref<64xf32, #tpu.memory_space<smem>>
    %148 = vector.broadcast %147 : f32 to vector<16x128xf32>
    %149 = arith.select %143, %148, %123 : vector<16x128xi1>, vector<16x128xf32>
    %c21 = arith.constant 21 : index
    %150 = memref.load %arg1[%c21] : memref<64xf32, #tpu.memory_space<smem>>
    %151 = vector.broadcast %150 : f32 to vector<16x128xf32>
    %152 = arith.select %143, %151, %126 : vector<16x128xi1>, vector<16x128xf32>
    %c29 = arith.constant 29 : index
    %153 = memref.load %arg1[%c29] : memref<64xf32, #tpu.memory_space<smem>>
    %154 = vector.broadcast %153 : f32 to vector<16x128xf32>
    %155 = arith.select %143, %154, %129 : vector<16x128xi1>, vector<16x128xf32>
    %c37 = arith.constant 37 : index
    %156 = memref.load %arg1[%c37] : memref<64xf32, #tpu.memory_space<smem>>
    %157 = vector.broadcast %156 : f32 to vector<16x128xf32>
    %158 = arith.select %143, %157, %132 : vector<16x128xi1>, vector<16x128xf32>
    %c45 = arith.constant 45 : index
    %159 = memref.load %arg1[%c45] : memref<64xf32, #tpu.memory_space<smem>>
    %160 = vector.broadcast %159 : f32 to vector<16x128xf32>
    %161 = arith.select %143, %160, %135 : vector<16x128xi1>, vector<16x128xf32>
    %c53 = arith.constant 53 : index
    %162 = memref.load %arg1[%c53] : memref<64xf32, #tpu.memory_space<smem>>
    %163 = vector.broadcast %162 : f32 to vector<16x128xf32>
    %164 = arith.select %143, %163, %138 : vector<16x128xi1>, vector<16x128xf32>
    %c61 = arith.constant 61 : index
    %165 = memref.load %arg1[%c61] : memref<64xf32, #tpu.memory_space<smem>>
    %166 = vector.broadcast %165 : f32 to vector<16x128xf32>
    %167 = arith.select %143, %166, %141 : vector<16x128xi1>, vector<16x128xf32>
    %c6_i32 = arith.constant 6 : i32
    %168 = vector.broadcast %c6_i32 : i32 to vector<16x128xi32>
    %169 = arith.cmpi eq, %3, %168 : vector<16x128xi32>
    %c6 = arith.constant 6 : index
    %170 = memref.load %arg1[%c6] : memref<64xf32, #tpu.memory_space<smem>>
    %171 = vector.broadcast %170 : f32 to vector<16x128xf32>
    %172 = arith.select %169, %171, %146 : vector<16x128xi1>, vector<16x128xf32>
    %c14 = arith.constant 14 : index
    %173 = memref.load %arg1[%c14] : memref<64xf32, #tpu.memory_space<smem>>
    %174 = vector.broadcast %173 : f32 to vector<16x128xf32>
    %175 = arith.select %169, %174, %149 : vector<16x128xi1>, vector<16x128xf32>
    %c22 = arith.constant 22 : index
    %176 = memref.load %arg1[%c22] : memref<64xf32, #tpu.memory_space<smem>>
    %177 = vector.broadcast %176 : f32 to vector<16x128xf32>
    %178 = arith.select %169, %177, %152 : vector<16x128xi1>, vector<16x128xf32>
    %c30 = arith.constant 30 : index
    %179 = memref.load %arg1[%c30] : memref<64xf32, #tpu.memory_space<smem>>
    %180 = vector.broadcast %179 : f32 to vector<16x128xf32>
    %181 = arith.select %169, %180, %155 : vector<16x128xi1>, vector<16x128xf32>
    %c38 = arith.constant 38 : index
    %182 = memref.load %arg1[%c38] : memref<64xf32, #tpu.memory_space<smem>>
    %183 = vector.broadcast %182 : f32 to vector<16x128xf32>
    %184 = arith.select %169, %183, %158 : vector<16x128xi1>, vector<16x128xf32>
    %c46 = arith.constant 46 : index
    %185 = memref.load %arg1[%c46] : memref<64xf32, #tpu.memory_space<smem>>
    %186 = vector.broadcast %185 : f32 to vector<16x128xf32>
    %187 = arith.select %169, %186, %161 : vector<16x128xi1>, vector<16x128xf32>
    %c54 = arith.constant 54 : index
    %188 = memref.load %arg1[%c54] : memref<64xf32, #tpu.memory_space<smem>>
    %189 = vector.broadcast %188 : f32 to vector<16x128xf32>
    %190 = arith.select %169, %189, %164 : vector<16x128xi1>, vector<16x128xf32>
    %c62 = arith.constant 62 : index
    %191 = memref.load %arg1[%c62] : memref<64xf32, #tpu.memory_space<smem>>
    %192 = vector.broadcast %191 : f32 to vector<16x128xf32>
    %193 = arith.select %169, %192, %167 : vector<16x128xi1>, vector<16x128xf32>
    %c7_i32 = arith.constant 7 : i32
    %194 = vector.broadcast %c7_i32 : i32 to vector<16x128xi32>
    %195 = arith.cmpi eq, %3, %194 : vector<16x128xi32>
    %c7 = arith.constant 7 : index
    %196 = memref.load %arg1[%c7] : memref<64xf32, #tpu.memory_space<smem>>
    %197 = vector.broadcast %196 : f32 to vector<16x128xf32>
    %198 = arith.select %195, %197, %172 : vector<16x128xi1>, vector<16x128xf32>
    %c15 = arith.constant 15 : index
    %199 = memref.load %arg1[%c15] : memref<64xf32, #tpu.memory_space<smem>>
    %200 = vector.broadcast %199 : f32 to vector<16x128xf32>
    %201 = arith.select %195, %200, %175 : vector<16x128xi1>, vector<16x128xf32>
    %c23 = arith.constant 23 : index
    %202 = memref.load %arg1[%c23] : memref<64xf32, #tpu.memory_space<smem>>
    %203 = vector.broadcast %202 : f32 to vector<16x128xf32>
    %204 = arith.select %195, %203, %178 : vector<16x128xi1>, vector<16x128xf32>
    %c31 = arith.constant 31 : index
    %205 = memref.load %arg1[%c31] : memref<64xf32, #tpu.memory_space<smem>>
    %206 = vector.broadcast %205 : f32 to vector<16x128xf32>
    %207 = arith.select %195, %206, %181 : vector<16x128xi1>, vector<16x128xf32>
    %c39 = arith.constant 39 : index
    %208 = memref.load %arg1[%c39] : memref<64xf32, #tpu.memory_space<smem>>
    %209 = vector.broadcast %208 : f32 to vector<16x128xf32>
    %210 = arith.select %195, %209, %184 : vector<16x128xi1>, vector<16x128xf32>
    %c47 = arith.constant 47 : index
    %211 = memref.load %arg1[%c47] : memref<64xf32, #tpu.memory_space<smem>>
    %212 = vector.broadcast %211 : f32 to vector<16x128xf32>
    %213 = arith.select %195, %212, %187 : vector<16x128xi1>, vector<16x128xf32>
    %c55 = arith.constant 55 : index
    %214 = memref.load %arg1[%c55] : memref<64xf32, #tpu.memory_space<smem>>
    %215 = vector.broadcast %214 : f32 to vector<16x128xf32>
    %216 = arith.select %195, %215, %190 : vector<16x128xi1>, vector<16x128xf32>
    %c63 = arith.constant 63 : index
    %217 = memref.load %arg1[%c63] : memref<64xf32, #tpu.memory_space<smem>>
    %218 = vector.broadcast %217 : f32 to vector<16x128xf32>
    %219 = arith.select %195, %218, %193 : vector<16x128xi1>, vector<16x128xf32>
    %220 = arith.index_cast %1 : i32 to index
    %c0_9 = arith.constant 0 : index
    %221 = vector.load %arg2[%220, %c0_9] : memref<16x128xi32, #tpu.memory_space<vmem>>, vector<16x128xi32>
    %c0_i32_10 = arith.constant 0 : i32
    %222 = vector.broadcast %c0_i32_10 : i32 to vector<16x128xi32>
    %223 = arith.cmpi eq, %221, %222 : vector<16x128xi32>
    %cst_11 = arith.constant 0.000000e+00 : f32
    %224 = vector.broadcast %cst_11 : f32 to vector<16x128xf32>
    %225 = arith.select %223, %198, %224 : vector<16x128xi1>, vector<16x128xf32>
    %c1_i32_12 = arith.constant 1 : i32
    %226 = vector.broadcast %c1_i32_12 : i32 to vector<16x128xi32>
    %227 = arith.cmpi eq, %221, %226 : vector<16x128xi32>
    %228 = arith.select %227, %201, %225 : vector<16x128xi1>, vector<16x128xf32>
    %c2_i32_13 = arith.constant 2 : i32
    %229 = vector.broadcast %c2_i32_13 : i32 to vector<16x128xi32>
    %230 = arith.cmpi eq, %221, %229 : vector<16x128xi32>
    %231 = arith.select %230, %204, %228 : vector<16x128xi1>, vector<16x128xf32>
    %c3_i32_14 = arith.constant 3 : i32
    %232 = vector.broadcast %c3_i32_14 : i32 to vector<16x128xi32>
    %233 = arith.cmpi eq, %221, %232 : vector<16x128xi32>
    %234 = arith.select %233, %207, %231 : vector<16x128xi1>, vector<16x128xf32>
    %c4_i32_15 = arith.constant 4 : i32
    %235 = vector.broadcast %c4_i32_15 : i32 to vector<16x128xi32>
    %236 = arith.cmpi eq, %221, %235 : vector<16x128xi32>
    %237 = arith.select %236, %210, %234 : vector<16x128xi1>, vector<16x128xf32>
    %c5_i32_16 = arith.constant 5 : i32
    %238 = vector.broadcast %c5_i32_16 : i32 to vector<16x128xi32>
    %239 = arith.cmpi eq, %221, %238 : vector<16x128xi32>
    %240 = arith.select %239, %213, %237 : vector<16x128xi1>, vector<16x128xf32>
    %c6_i32_17 = arith.constant 6 : i32
    %241 = vector.broadcast %c6_i32_17 : i32 to vector<16x128xi32>
    %242 = arith.cmpi eq, %221, %241 : vector<16x128xi32>
    %243 = arith.select %242, %216, %240 : vector<16x128xi1>, vector<16x128xf32>
    %c7_i32_18 = arith.constant 7 : i32
    %244 = vector.broadcast %c7_i32_18 : i32 to vector<16x128xi32>
    %245 = arith.cmpi eq, %221, %244 : vector<16x128xi32>
    %246 = arith.select %245, %219, %243 : vector<16x128xi1>, vector<16x128xf32>
    %247 = arith.index_cast %1 : i32 to index
    %c0_19 = arith.constant 0 : index
    %248 = vector.load %arg4[%247, %c0_19] : memref<16x128xf32, #tpu.memory_space<vmem>>, vector<16x128xf32>
    tpu.vector_store %arg4[%247, %c0_19], %246 {strides = array<i32>} : memref<16x128xf32, #tpu.memory_space<vmem>>, vector<16x128xf32>,
    %c1_i32_20 = arith.constant 1 : i32
    return
  }
  func.func @transform_0(%arg0: i32) -> i32 {
    %c0_i32 = arith.constant 0 : i32
    %c0_i32_0 = arith.constant 0 : i32
    return %c0_i32 : i32
  }
  func.func @transform_1(%arg0: i32) -> (i32, i32) {
    %c0_i32 = arith.constant 0 : i32
    %c0_i32_0 = arith.constant 0 : i32
    return %arg0, %c0_i32 : i32, i32
  }
  func.func @transform_2(%arg0: i32) -> (i32, i32) {
    %c0_i32 = arith.constant 0 : i32
    %c0_i32_0 = arith.constant 0 : i32
    return %arg0, %c0_i32 : i32, i32
  }
  func.func @transform_3(%arg0: i32) -> (i32, i32) {
    %c0_i32 = arith.constant 0 : i32
    %c0_i32_0 = arith.constant 0 : i32
    return %arg0, %c0_i32 : i32, i32
  }
}

</mosaic_0001>

<llo_original>
// kernel: tpu_custom_call.1
$region0: #{tpu_custom_call.1}
  #allocation0 [shape = 'u32[]', space=smem, size = 0x4, offset = 0x4, fixed_abs, tag = 'smem constant byte address 0x4 - core index']
  #allocation1 [shape = 'u32[144,128]{1,0:T(1,128)}', space=vmem, size = 0x12000, scoped, tag = 'internal scratch']
  %s0 = inlined_call_operand.hbm [shape: f32[64], index: 0, kind: input, shape index: {}]
  %s1 = inlined_call_operand.hbm [shape: s32[16,128], index: 1, kind: input, shape index: {}]
  %s2 = inlined_call_operand.hbm [shape: s32[16,128], index: 2, kind: input, shape index: {}]
  %s3 = inlined_call_operand.hbm [shape: f32[16,128], index: 3, kind: output, shape index: {}]
  %s4 = sld [smem:[#allocation0]]
  $region34: #{tpu_custom_call.1} parent=0
    _
  %s6 = ssub.s32 1, %s4
  %s7 = scalar_select 0, %s6, %s4
  $region1: #{tpu_custom_call.1} parent=0
    #allocation2 [shape = 'u8[512]{0}', space=smem, size = 0x200, scoped, tag = 'input window, operand 0, single buffered']
    #allocation3 [shape = 's32[1]{0}', space=sflag, size = 0x4, scoped, tag = 'scoped memory for tpu_custom_call.1']
    #allocation4 [shape = 's32[1]{0}', space=sflag, size = 0x4, scoped, tag = 'scoped memory for tpu_custom_call.1']
    #allocation5 [shape = 's32[1]{0}', space=sflag, size = 0x4, scoped, tag = 'scoped memory for tpu_custom_call.1']
    #allocation6 [shape = 'u8[8192]{0}', space=vmem, size = 0x2000, scoped, tag = 'input window, operand 1, single buffered']
    #allocation7 [shape = 'u8[8192]{0}', space=vmem, size = 0x2000, scoped, tag = 'input window, operand 2, single buffered']
    #allocation8 [shape = 's32[1]{0}', space=sflag, size = 0x4, scoped, tag = 'scoped memory for tpu_custom_call.1']
    #allocation9 [shape = 'u8[8192]{0}', space=vmem, size = 0x2000, scoped, tag = 'output window, operand 0, single buffered']
    %8 = vsyncpa [#allocation5], 0
    %9 = vsyncpa [#allocation3], 0
    %10 = vsyncpa [#allocation8], 0
    %11 = vsyncpa [#allocation4], 0
    // Predicated region
    $region2: #{tpu_custom_call.1} parent=1 // pred_check
      _
    $region3: #{tpu_custom_call.1} parent=1 // pred_check_branch
      %13 = sbr.rel (0) target = $region5
    $region4: #{tpu_custom_call.1} parent=1 // pred_region
      %s15 = ssub.s32 16, 16
      %16 = vsyncadd [#allocation5], %s15
      %19 = dma.hbm_to_smem %s0, 16, [#allocation2], [#allocation5]
    $region5: #{tpu_custom_call.1} parent=1 // pred_fallthru
      _
    // Predicated region
    $region6: #{tpu_custom_call.1} parent=1 // pred_check
      _
    $region7: #{tpu_custom_call.1} parent=1 // pred_check_branch
      %21 = sbr.rel (0) target = $region9
    $region8: #{tpu_custom_call.1} parent=1 // pred_region
      %s23 = ssub.s32 256, 256
      %24 = vsyncadd [#allocation3], %s23
      %s25 = sshll.u32 [#allocation6], 4
      %s26 = int_to_ptr.vmem [resolvable:$true] %s25
      %31 = dma.hbm_to_vmem [thread:$0]  %s1, 256, %s26, [#allocation3], 128, 128, 8
    $region9: #{tpu_custom_call.1} parent=1 // pred_fallthru
      _
    // Predicated region
    $region10: #{tpu_custom_call.1} parent=1 // pred_check
      _
    $region11: #{tpu_custom_call.1} parent=1 // pred_check_branch
      %33 = sbr.rel (0) target = $region13
    $region12: #{tpu_custom_call.1} parent=1 // pred_region
      %s35 = ssub.s32 256, 256
      %36 = vsyncadd [#allocation8], %s35
      %s37 = sshll.u32 [#allocation7], 4
      %s38 = int_to_ptr.vmem [resolvable:$true] %s37
      %43 = dma.hbm_to_vmem [thread:$0]  %s2, 256, %s38, [#allocation8], 128, 128, 8
    $region13: #{tpu_custom_call.1} parent=1 // pred_fallthru
      _
    // Predicated region
    $region14: #{tpu_custom_call.1} parent=1 // pred_check
      _
    $region15: #{tpu_custom_call.1} parent=1 // pred_check_branch
      %45 = sbr.rel (0) target = $region17
    $region16: #{tpu_custom_call.1} parent=1 // pred_region
      %46 = dma.done [#allocation5], 16
    $region17: #{tpu_custom_call.1} parent=1 // pred_fallthru
      _
    // Predicated region
    $region18: #{tpu_custom_call.1} parent=1 // pred_check
      _
    $region19: #{tpu_custom_call.1} parent=1 // pred_check_branch
      %48 = sbr.rel (0) target = $region21
    $region20: #{tpu_custom_call.1} parent=1 // pred_region
      %49 = dma.done [#allocation3], 256
    $region21: #{tpu_custom_call.1} parent=1 // pred_fallthru
      _
    // Predicated region
    $region22: #{tpu_custom_call.1} parent=1 // pred_check
      _
    $region23: #{tpu_custom_call.1} parent=1 // pred_check_branch
      %51 = sbr.rel (0) target = $region25
    $region24: #{tpu_custom_call.1} parent=1 // pred_region
      %52 = dma.done [#allocation8], 256
    $region25: #{tpu_custom_call.1} parent=1 // pred_fallthru
      _
    %53 = sfence
    %v54 = vld [vmem:[#allocation7] sm:$0xff]
    %v55 = vld [vmem:[#allocation7 + $0x8] sm:$0xff]
    %vm56 = vcmp.eq.s32.totalorder %v54, 0
    %vm57 = vcmp.eq.s32.totalorder %v55, 0
    %s58 = sld [smem:[#allocation2]]
    %v59 = vstv %s58
    %v60 = vsel %vm56, %v59, 0.0
    %v61 = vsel %vm57, %v59, 0.0
    %s62 = sld [smem:[#allocation2 + $0x8]]
    %v63 = vstv %s62
    %v64 = vsel %vm56, %v63, 0.0
    %v65 = vsel %vm57, %v63, 0.0
    %s66 = sld [smem:[#allocation2 + $0x10]]
    %v67 = vstv %s66
    %v68 = vsel %vm56, %v67, 0.0
    %v69 = vsel %vm57, %v67, 0.0
    %s70 = sld [smem:[#allocation2 + $0x18]]
    %v71 = vstv %s70
    %v72 = vsel %vm56, %v71, 0.0
    %v73 = vsel %vm57, %v71, 0.0
    %s74 = sld [smem:[#allocation2 + $0x20]]
    %v75 = vstv %s74
    %v76 = vsel %vm56, %v75, 0.0
    %v77 = vsel %vm57, %v75, 0.0
    %s78 = sld [smem:[#allocation2 + $0x28]]
    %v79 = vstv %s78
    %v80 = vsel %vm56, %v79, 0.0
    %v81 = vsel %vm57, %v79, 0.0
    %s82 = sld [smem:[#allocation2 + $0x30]]
    %v83 = vstv %s82
    %v84 = vsel %vm56, %v83, 0.0
    %v85 = vsel %vm57, %v83, 0.0
    %s86 = sld [smem:[#allocation2 + $0x38]]
    %v87 = vstv %s86
    %v88 = vsel %vm56, %v87, 0.0
    %v89 = vsel %vm57, %v87, 0.0
    %vm90 = vcmp.eq.s32.totalorder %v54, 1
    %vm91 = vcmp.eq.s32.totalorder %v55, 1
    %s92 = sld [smem:[#allocation2 + $0x1]]
    %v93 = vstv %s92
    %v94 = vsel %vm90, %v93, %v60
    %v95 = vsel %vm91, %v93, %v61
    %s96 = sld [smem:[#allocation2 + $0x9]]
    %v97 = vstv %s96
    %v98 = vsel %vm90, %v97, %v64
    %v99 = vsel %vm91, %v97, %v65
    %s100 = sld [smem:[#allocation2 + $0x11]]
    %v101 = vstv %s100
    %v102 = vsel %vm90, %v101, %v68
    %v103 = vsel %vm91, %v101, %v69
    %s104 = sld [smem:[#allocation2 + $0x19]]
    %v105 = vstv %s104
    %v106 = vsel %vm90, %v105, %v72
    %v107 = vsel %vm91, %v105, %v73
    %s108 = sld [smem:[#allocation2 + $0x21]]
    %v109 = vstv %s108
    %v110 = vsel %vm90, %v109, %v76
    %v111 = vsel %vm91, %v109, %v77
    %s112 = sld [smem:[#allocation2 + $0x29]]
    %v113 = vstv %s112
    %v114 = vsel %vm90, %v113, %v80
    %v115 = vsel %vm91, %v113, %v81
    %s116 = sld [smem:[#allocation2 + $0x31]]
    %v117 = vstv %s116
    %v118 = vsel %vm90, %v117, %v84
    %v119 = vsel %vm91, %v117, %v85
    %s120 = sld [smem:[#allocation2 + $0x39]]
    %v121 = vstv %s120
    %v122 = vsel %vm90, %v121, %v88
    %v123 = vsel %vm91, %v121, %v89
    %vm124 = vcmp.eq.s32.totalorder %v54, 2
    %vm125 = vcmp.eq.s32.totalorder %v55, 2
    %s126 = sld [smem:[#allocation2 + $0x2]]
    %v127 = vstv %s126
    %v128 = vsel %vm124, %v127, %v94
    %v129 = vsel %vm125, %v127, %v95
    %s130 = sld [smem:[#allocation2 + $0xa]]
    %v131 = vstv %s130
    %v132 = vsel %vm124, %v131, %v98
    %v133 = vsel %vm125, %v131, %v99
    %s134 = sld [smem:[#allocation2 + $0x12]]
    %v135 = vstv %s134
    %v136 = vsel %vm124, %v135, %v102
    %v137 = vsel %vm125, %v135, %v103
    %s138 = sld [smem:[#allocation2 + $0x1a]]
    %v139 = vstv %s138
    %v140 = vsel %vm124, %v139, %v106
    %v141 = vsel %vm125, %v139, %v107
    %s142 = sld [smem:[#allocation2 + $0x22]]
    %v143 = vstv %s142
    %v144 = vsel %vm124, %v143, %v110
    %v145 = vsel %vm125, %v143, %v111
    %s146 = sld [smem:[#allocation2 + $0x2a]]
    %v147 = vstv %s146
    %v148 = vsel %vm124, %v147, %v114
    %v149 = vsel %vm125, %v147, %v115
    %s150 = sld [smem:[#allocation2 + $0x32]]
    %v151 = vstv %s150
    %v152 = vsel %vm124, %v151, %v118
    %v153 = vsel %vm125, %v151, %v119
    %s154 = sld [smem:[#allocation2 + $0x3a]]
    %v155 = vstv %s154
    %v156 = vsel %vm124, %v155, %v122
    %v157 = vsel %vm125, %v155, %v123
    %vm158 = vcmp.eq.s32.totalorder %v54, 3
    %vm159 = vcmp.eq.s32.totalorder %v55, 3
    %s160 = sld [smem:[#allocation2 + $0x3]]
    %v161 = vstv %s160
    %v162 = vsel %vm158, %v161, %v128
    %v163 = vsel %vm159, %v161, %v129
    %s164 = sld [smem:[#allocation2 + $0xb]]
    %v165 = vstv %s164
    %v166 = vsel %vm158, %v165, %v132
    %v167 = vsel %vm159, %v165, %v133
    %s168 = sld [smem:[#allocation2 + $0x13]]
    %v169 = vstv %s168
    %v170 = vsel %vm158, %v169, %v136
    %v171 = vsel %vm159, %v169, %v137
    %s172 = sld [smem:[#allocation2 + $0x1b]]
    %v173 = vstv %s172
    %v174 = vsel %vm158, %v173, %v140
    %v175 = vsel %vm159, %v173, %v141
    %s176 = sld [smem:[#allocation2 + $0x23]]
    %v177 = vstv %s176
    %v178 = vsel %vm158, %v177, %v144
    %v179 = vsel %vm159, %v177, %v145
    %s180 = sld [smem:[#allocation2 + $0x2b]]
    %v181 = vstv %s180
    %v182 = vsel %vm158, %v181, %v148
    %v183 = vsel %vm159, %v181, %v149
    %s184 = sld [smem:[#allocation2 + $0x33]]
    %v185 = vstv %s184
    %v186 = vsel %vm158, %v185, %v152
    %v187 = vsel %vm159, %v185, %v153
    %s188 = sld [smem:[#allocation2 + $0x3b]]
    %v189 = vstv %s188
    %v190 = vsel %vm158, %v189, %v156
    %v191 = vsel %vm159, %v189, %v157
    %vm192 = vcmp.eq.s32.totalorder %v54, 4
    %vm193 = vcmp.eq.s32.totalorder %v55, 4
    %s194 = sld [smem:[#allocation2 + $0x4]]
    %v195 = vstv %s194
    %v196 = vsel %vm192, %v195, %v162
    %v197 = vsel %vm193, %v195, %v163
    %s198 = sld [smem:[#allocation2 + $0xc]]
    %v199 = vstv %s198
    %v200 = vsel %vm192, %v199, %v166
    %v201 = vsel %vm193, %v199, %v167
    %s202 = sld [smem:[#allocation2 + $0x14]]
    %v203 = vstv %s202
    %v204 = vsel %vm192, %v203, %v170
    %v205 = vsel %vm193, %v203, %v171
    %s206 = sld [smem:[#allocation2 + $0x1c]]
    %v207 = vstv %s206
    %v208 = vsel %vm192, %v207, %v174
    %v209 = vsel %vm193, %v207, %v175
    %s210 = sld [smem:[#allocation2 + $0x24]]
    %v211 = vstv %s210
    %v212 = vsel %vm192, %v211, %v178
    %v213 = vsel %vm193, %v211, %v179
    %s214 = sld [smem:[#allocation2 + $0x2c]]
    %v215 = vstv %s214
    %v216 = vsel %vm192, %v215, %v182
    %v217 = vsel %vm193, %v215, %v183
    %s218 = sld [smem:[#allocation2 + $0x34]]
    %v219 = vstv %s218
    %v220 = vsel %vm192, %v219, %v186
    %v221 = vsel %vm193, %v219, %v187
    %s222 = sld [smem:[#allocation2 + $0x3c]]
    %v223 = vstv %s222
    %v224 = vsel %vm192, %v223, %v190
    %v225 = vsel %vm193, %v223, %v191
    %vm226 = vcmp.eq.s32.totalorder %v54, 5
    %vm227 = vcmp.eq.s32.totalorder %v55, 5
    %s228 = sld [smem:[#allocation2 + $0x5]]
    %v229 = vstv %s228
    %v230 = vsel %vm226, %v229, %v196
    %v231 = vsel %vm227, %v229, %v197
    %s232 = sld [smem:[#allocation2 + $0xd]]
    %v233 = vstv %s232
    %v234 = vsel %vm226, %v233, %v200
    %v235 = vsel %vm227, %v233, %v201
    %s236 = sld [smem:[#allocation2 + $0x15]]
    %v237 = vstv %s236
    %v238 = vsel %vm226, %v237, %v204
    %v239 = vsel %vm227, %v237, %v205
    %s240 = sld [smem:[#allocation2 + $0x1d]]
    %v241 = vstv %s240
    %v242 = vsel %vm226, %v241, %v208
    %v243 = vsel %vm227, %v241, %v209
    %s244 = sld [smem:[#allocation2 + $0x25]]
    %v245 = vstv %s244
    %v246 = vsel %vm226, %v245, %v212
    %v247 = vsel %vm227, %v245, %v213
    %s248 = sld [smem:[#allocation2 + $0x2d]]
    %v249 = vstv %s248
    %v250 = vsel %vm226, %v249, %v216
    %v251 = vsel %vm227, %v249, %v217
    %s252 = sld [smem:[#allocation2 + $0x35]]
    %v253 = vstv %s252
    %v254 = vsel %vm226, %v253, %v220
    %v255 = vsel %vm227, %v253, %v221
    %s256 = sld [smem:[#allocation2 + $0x3d]]
    %v257 = vstv %s256
    %v258 = vsel %vm226, %v257, %v224
    %v259 = vsel %vm227, %v257, %v225
    %vm260 = vcmp.eq.s32.totalorder %v54, 6
    %vm261 = vcmp.eq.s32.totalorder %v55, 6
    %s262 = sld [smem:[#allocation2 + $0x6]]
    %v263 = vstv %s262
    %v264 = vsel %vm260, %v263, %v230
    %v265 = vsel %vm261, %v263, %v231
    %s266 = sld [smem:[#allocation2 + $0xe]]
    %v267 = vstv %s266
    %v268 = vsel %vm260, %v267, %v234
    %v269 = vsel %vm261, %v267, %v235
    %s270 = sld [smem:[#allocation2 + $0x16]]
    %v271 = vstv %s270
    %v272 = vsel %vm260, %v271, %v238
    %v273 = vsel %vm261, %v271, %v239
    %s274 = sld [smem:[#allocation2 + $0x1e]]
    %v275 = vstv %s274
    %v276 = vsel %vm260, %v275, %v242
    %v277 = vsel %vm261, %v275, %v243
    %s278 = sld [smem:[#allocation2 + $0x26]]
    %v279 = vstv %s278
    %v280 = vsel %vm260, %v279, %v246
    %v281 = vsel %vm261, %v279, %v247
    %s282 = sld [smem:[#allocation2 + $0x2e]]
    %v283 = vstv %s282
    %v284 = vsel %vm260, %v283, %v250
    %v285 = vsel %vm261, %v283, %v251
    %s286 = sld [smem:[#allocation2 + $0x36]]
    %v287 = vstv %s286
    %v288 = vsel %vm260, %v287, %v254
    %v289 = vsel %vm261, %v287, %v255
    %s290 = sld [smem:[#allocation2 + $0x3e]]
    %v291 = vstv %s290
    %v292 = vsel %vm260, %v291, %v258
    %v293 = vsel %vm261, %v291, %v259
    %vm294 = vcmp.eq.s32.totalorder %v54, 7
    %vm295 = vcmp.eq.s32.totalorder %v55, 7
    %s296 = sld [smem:[#allocation2 + $0x7]]
    %v297 = vstv %s296
    %v298 = vsel %vm294, %v297, %v264
    %v299 = vsel %vm295, %v297, %v265
    %s300 = sld [smem:[#allocation2 + $0xf]]
    %v301 = vstv %s300
    %v302 = vsel %vm294, %v301, %v268
    %v303 = vsel %vm295, %v301, %v269
    %s304 = sld [smem:[#allocation2 + $0x17]]
    %v305 = vstv %s304
    %v306 = vsel %vm294, %v305, %v272
    %v307 = vsel %vm295, %v305, %v273
    %s308 = sld [smem:[#allocation2 + $0x1f]]
    %v309 = vstv %s308
    %v310 = vsel %vm294, %v309, %v276
    %v311 = vsel %vm295, %v309, %v277
    %s312 = sld [smem:[#allocation2 + $0x27]]
    %v313 = vstv %s312
    %v314 = vsel %vm294, %v313, %v280
    %v315 = vsel %vm295, %v313, %v281
    %s316 = sld [smem:[#allocation2 + $0x2f]]
    %v317 = vstv %s316
    %v318 = vsel %vm294, %v317, %v284
    %v319 = vsel %vm295, %v317, %v285
    %s320 = sld [smem:[#allocation2 + $0x37]]
    %v321 = vstv %s320
    %v322 = vsel %vm294, %v321, %v288
    %v323 = vsel %vm295, %v321, %v289
    %s324 = sld [smem:[#allocation2 + $0x3f]]
    %v325 = vstv %s324
    %v326 = vsel %vm294, %v325, %v292
    %v327 = vsel %vm295, %v325, %v293
    %v328 = vld [vmem:[#allocation6] sm:$0xff]
    %v329 = vld [vmem:[#allocation6 + $0x8] sm:$0xff]
    %vm330 = vcmp.eq.s32.totalorder %v328, 0
    %vm331 = vcmp.eq.s32.totalorder %v329, 0
    %v332 = vsel %vm330, %v298, 0.0
    %v333 = vsel %vm331, %v299, 0.0
    %vm334 = vcmp.eq.s32.totalorder %v328, 1
    %vm335 = vcmp.eq.s32.totalorder %v329, 1
    %v336 = vsel %vm334, %v302, %v332
    %v337 = vsel %vm335, %v303, %v333
    %vm338 = vcmp.eq.s32.totalorder %v328, 2
    %vm339 = vcmp.eq.s32.totalorder %v329, 2
    %v340 = vsel %vm338, %v306, %v336
    %v341 = vsel %vm339, %v307, %v337
    %vm342 = vcmp.eq.s32.totalorder %v328, 3
    %vm343 = vcmp.eq.s32.totalorder %v329, 3
    %v344 = vsel %vm342, %v310, %v340
    %v345 = vsel %vm343, %v311, %v341
    %vm346 = vcmp.eq.s32.totalorder %v328, 4
    %vm347 = vcmp.eq.s32.totalorder %v329, 4
    %v348 = vsel %vm346, %v314, %v344
    %v349 = vsel %vm347, %v315, %v345
    %vm350 = vcmp.eq.s32.totalorder %v328, 5
    %vm351 = vcmp.eq.s32.totalorder %v329, 5
    %v352 = vsel %vm350, %v318, %v348
    %v353 = vsel %vm351, %v319, %v349
    %vm354 = vcmp.eq.s32.totalorder %v328, 6
    %vm355 = vcmp.eq.s32.totalorder %v329, 6
    %v356 = vsel %vm354, %v322, %v352
    %v357 = vsel %vm355, %v323, %v353
    %vm358 = vcmp.eq.s32.totalorder %v328, 7
    %vm359 = vcmp.eq.s32.totalorder %v329, 7
    %v360 = vsel %vm358, %v326, %v356
    %v361 = vsel %vm359, %v327, %v357
    %362 = vst [vmem:[#allocation9] sm:$0xff] %v360
    %363 = vst [vmem:[#allocation9 + $0x8] sm:$0xff] %v361
    // Predicated region
    $region26: #{tpu_custom_call.1} parent=1 // pred_check
      _
    $region27: #{tpu_custom_call.1} parent=1 // pred_check_branch
      %365 = sbr.rel (0) target = $region29
    $region28: #{tpu_custom_call.1} parent=1 // pred_region
      %s367 = ssub.s32 256, 256
      %368 = vsyncadd [#allocation4], %s367
      %s369 = sshll.u32 [#allocation9], 4
      %s370 = int_to_ptr.vmem [resolvable:$true] %s369
      %375 = dma.vmem_to_hbm [thread:$0]  %s370, 256, %s3, [#allocation4], 128, 128, 8
    $region29: #{tpu_custom_call.1} parent=1 // pred_fallthru
      _
    // Predicated region
    $region30: #{tpu_custom_call.1} parent=1 // pred_check
      _
    $region31: #{tpu_custom_call.1} parent=1 // pred_check_branch
      %377 = sbr.rel (0) target = $region33
    $region32: #{tpu_custom_call.1} parent=1 // pred_region
      %378 = dma.done [#allocation4], 256
    $region33: #{tpu_custom_call.1} parent=1 // pred_fallthru
      _
    %379 = vsyncpa [#allocation3], 1
    %380 = vsyncpa [#allocation8], 1
    %381 = vsyncpa [#allocation4], 1
    %382 = vsyncpa [#allocation5], 1

</llo_original>
